<compile_context>
chip_gen: v7x
topology: tpu7x:2x2x1
jax: 0.10.0
libtpu: 0.0.40
codegen_flags: <defaults>
</compile_context>

<pallas_src>
import jax
import jax.numpy as jnp
from jax.experimental import pallas as pl
from jax.experimental.pallas import tpu as pltpu


# ---------------------------------------------------------------------------
# Pallas kernel: out = act( A@W + bias [+ residual | + A_sc@W_sc + bias_sc] )
# A/W are bf16, accumulation + epilogue in f32.
# ---------------------------------------------------------------------------
def _make_kernel(relu: bool, mode: str):
    # mode: "none" | "add" (identity residual) | "proj" (fused 1x1 shortcut)
    def kernel(a_ref, w_ref, b_ref, *rest):
        acc = jnp.dot(a_ref[...], w_ref[...], preferred_element_type=jnp.float32)
        out = acc + b_ref[...]
        if mode == "add":
            r_ref, o_ref = rest
            out = out + r_ref[...].astype(jnp.float32)
        elif mode == "proj":
            a_sc_ref, w_sc_ref, b_sc_ref, o_ref = rest
            sc = jnp.dot(a_sc_ref[...], w_sc_ref[...],
                         preferred_element_type=jnp.float32)
            out = out + sc + b_sc_ref[...]
        else:
            (o_ref,) = rest
        if relu:
            out = jnp.maximum(out, 0.0)
        o_ref[...] = out.astype(o_ref.dtype)

    return kernel


def _round_up(x, m):
    return ((x + m - 1) // m) * m


def fused_conv(a, w, bias, *, residual=None, shortcut=None, relu=True,
               tm=512, out_dtype=jnp.bfloat16):
    """Fused conv-as-matmul.

    a:    (M, K)  bf16 im2col matrix
    w:    (K, Cp) bf16 weights (BN scale folded, Cout padded to Cp % 128 == 0)
    bias: (1, Cp) f32 BN bias
    residual: (M, Cp) identity residual (added in epilogue), or
    shortcut: (a_sc (M, Ksc) bf16, w_sc (Ksc, Cp) bf16, b_sc (1, Cp) f32)
    Returns (M, Cp) in out_dtype.
    """
    M, K = a.shape
    Kw, Cp = w.shape
    assert K == Kw and Cp % 128 == 0 and bias.shape == (1, Cp)

    # Keep tm fixed; pad M up to a multiple of tm (zero rows are sliced off).
    Mp = _round_up(M, tm)
    pad_m = Mp - M
    if pad_m:
        a = jnp.pad(a, ((0, pad_m), (0, 0)))

    in_specs = [
        pl.BlockSpec((tm, K), lambda i: (i, 0)),    # A tile
        pl.BlockSpec((K, Cp), lambda i: (0, 0)),    # full weight (scale folded)
        pl.BlockSpec((1, Cp), lambda i: (0, 0)),    # BN bias
    ]
    args = [a, w, bias]

    if residual is not None:
        if pad_m:
            residual = jnp.pad(residual, ((0, pad_m), (0, 0)))
        in_specs.append(pl.BlockSpec((tm, Cp), lambda i: (i, 0)))
        args.append(residual)
        mode = "add"
    elif shortcut is not None:
        a_sc, w_sc, b_sc = shortcut
        Ksc = a_sc.shape[1]
        if pad_m:
            a_sc = jnp.pad(a_sc, ((0, pad_m), (0, 0)))
        in_specs += [
            pl.BlockSpec((tm, Ksc), lambda i: (i, 0)),
            pl.BlockSpec((Ksc, Cp), lambda i: (0, 0)),
            pl.BlockSpec((1, Cp), lambda i: (0, 0)),
        ]
        args += [a_sc, w_sc, b_sc]
        mode = "proj"
    else:
        mode = "none"

    out = pl.pallas_call(
        _make_kernel(relu, mode),
        out_shape=jax.ShapeDtypeStruct((Mp, Cp), out_dtype),
        grid=(Mp // tm,),
        in_specs=in_specs,
        out_specs=pl.BlockSpec((tm, Cp), lambda i: (i, 0)),
        compiler_params=pltpu.CompilerParams(
            dimension_semantics=("parallel",),
            vmem_limit_bytes=56 * 1024 * 1024,
        ),
    )(*args)
    return out[:M] if pad_m else out


# ---------------------------------------------------------------------------
# Glue: im2col, BN folding, weight layout (pure data movement, done in bf16).
# ---------------------------------------------------------------------------
def _out_hw(h, stride):
    return (h + 2 - 3) // stride + 1


def im2col_3x3(x_nhwc, stride):
    """x: (N, H, W, C) -> (N*Ho*Wo, 9*C), columns ordered (kh, kw, c)."""
    N, H, W, C = x_nhwc.shape
    Ho, Wo = _out_hw(H, stride), _out_hw(W, stride)
    xp = jnp.pad(x_nhwc, ((0, 0), (1, 1), (1, 1), (0, 0)))
    cols = []
    for kh in range(3):
        for kw in range(3):
            patch = xp[:,
                       kh:kh + (Ho - 1) * stride + 1:stride,
                       kw:kw + (Wo - 1) * stride + 1:stride, :]
            cols.append(patch)
    a = jnp.concatenate(cols, axis=-1)          # (N, Ho, Wo, 9*C)
    return a.reshape(N * Ho * Wo, 9 * C)


def fold_bn(bn, eps=1e-5):
    gamma, beta, mean, var = bn
    scale = gamma / jnp.sqrt(var + eps)
    bias = beta - mean * scale
    return scale, bias


def flatten_w3x3(w_oihw):
    # (Cout, Cin, 3, 3) -> (kh, kw, Cin, Cout) -> (9*Cin, Cout); im2col order.
    Cout, Cin, _, _ = w_oihw.shape
    return jnp.transpose(w_oihw, (2, 3, 1, 0)).reshape(9 * Cin, Cout)


def fold_scale_into_w(w_kc, scale, cp):
    """(K, Cout) f32 weights * BN scale, pad Cout->cp, cast bf16."""
    K, Cout = w_kc.shape
    wf = w_kc * scale[None, :]
    wf = jnp.pad(wf, ((0, 0), (0, cp - Cout)))
    return wf.astype(jnp.bfloat16)


def pad_bias(b, cp):
    Cout = b.shape[0]
    return jnp.pad(b, (0, cp - Cout)).reshape(1, cp).astype(jnp.float32)


# ---------------------------------------------------------------------------
# BasicBlock forward (NCHW in / NCHW out, like PyTorch).
# ---------------------------------------------------------------------------
def basic_block_forward(x_nchw, params, stride=1, tm=512, eps=1e-5):
    Cout = params["w1"].shape[0]
    x = jnp.transpose(x_nchw, (0, 2, 3, 1)).astype(jnp.float32)   # -> NHWC
    N, H, W, Cin = x.shape
    Ho, Wo = _out_hw(H, stride), _out_hw(W, stride)
    M = N * Ho * Wo
    Cp = _round_up(Cout, 128)                 # lane-dense output channels
    x_bf = x.astype(jnp.bfloat16)

    # conv1 + bn1 + relu  (fused)
    s1, b1 = fold_bn(params["bn1"], eps)
    w1f = fold_scale_into_w(flatten_w3x3(params["w1"]), s1, Cp)
    out1 = fused_conv(im2col_3x3(x_bf, stride), w1f, pad_bias(b1, Cp),
                      relu=True, tm=tm, out_dtype=jnp.bfloat16)
    out1_nhwc = out1[:, :Cout].reshape(N, Ho, Wo, Cout)           # bf16

    # conv2 + bn2 + residual + relu  (fused; shortcut fused in-kernel)
    s2, b2 = fold_bn(params["bn2"], eps)
    w2f = fold_scale_into_w(flatten_w3x3(params["w2"]), s2, Cp)
    a2 = im2col_3x3(out1_nhwc, 1)

    if stride != 1 or Cin != Cout:
        # 1x1 projection shortcut computed inside the conv2 kernel.
        a_sc = x_bf[:, ::stride, ::stride, :].reshape(M, Cin)
        w_sc = jnp.transpose(params["w_sc"][:, :, 0, 0], (1, 0))  # (Cin, Cout)
        s_sc, b_sc = fold_bn(params["bn_sc"], eps)
        out2 = fused_conv(
            a2, w2f, pad_bias(b2, Cp),
            shortcut=(a_sc, fold_scale_into_w(w_sc, s_sc, Cp), pad_bias(b_sc, Cp)),
            relu=True, tm=tm, out_dtype=jnp.float32)
    else:
        res = jnp.pad(x.reshape(M, Cin), ((0, 0), (0, Cp - Cout)))  # f32 identity
        out2 = fused_conv(a2, w2f, pad_bias(b2, Cp), residual=res,
                          relu=True, tm=tm, out_dtype=jnp.float32)

    out2 = out2[:, :Cout].reshape(N, Ho, Wo, Cout)
    return jnp.transpose(out2, (0, 3, 1, 2))                      # -> NCHW


# ---------------------------------------------------------------------------
# Pure-JAX f32 reference (NCHW, lax.conv) for correctness check.
# ---------------------------------------------------------------------------
def ref_forward(x, params, stride=1, eps=1e-5):
    def conv(x, w, s, pad):
        return jax.lax.conv_general_dilated(
            x, w, (s, s), [(pad, pad), (pad, pad)],
            dimension_numbers=("NCHW", "OIHW", "NCHW"))

    def bn(x, p):
        g, b, m, v = [t[None, :, None, None] for t in p]
        return (x - m) / jnp.sqrt(v + eps) * g + b

    out = jax.nn.relu(bn(conv(x, params["w1"], stride, 1), params["bn1"]))
    out = bn(conv(out, params["w2"], 1, 1), params["bn2"])
    if "w_sc" in params:
        sc = bn(conv(x, params["w_sc"], stride, 0), params["bn_sc"])
    else:
        sc = x
    return jax.nn.relu(out + sc)


# ---------------------------------------------------------------------------
def init_params(key, in_c, out_c, stride):
    ks = jax.random.split(key, 10)

    def bn_params(k):
        k1, k2, k3, k4 = jax.random.split(k, 4)
        return (jax.random.uniform(k1, (out_c,), minval=0.5, maxval=1.5),
                0.1 * jax.random.normal(k2, (out_c,)),
                0.1 * jax.random.normal(k3, (out_c,)),
                jax.random.uniform(k4, (out_c,), minval=0.5, maxval=1.5))

    p = {
        "w1": 0.1 * jax.random.normal(ks[0], (out_c, in_c, 3, 3), jnp.float32),
        "bn1": bn_params(ks[1]),
        "w2": 0.1 * jax.random.normal(ks[2], (out_c, out_c, 3, 3), jnp.float32),
        "bn2": bn_params(ks[3]),
    }
    if stride != 1 or in_c != out_c:
        p["w_sc"] = 0.1 * jax.random.normal(ks[4], (out_c, in_c, 1, 1), jnp.float32)
        p["bn_sc"] = bn_params(ks[5])
    return p


def _run_and_check(key, N, in_c, out_c, H, W, stride, tm):
    kx, kp = jax.random.split(key)
    x = jax.random.normal(kx, (N, in_c, H, W), jnp.float32)   # NCHW, like PyTorch
    params = init_params(kp, in_c, out_c, stride)

    out = jax.block_until_ready(basic_block_forward(x, params, stride=stride, tm=tm))
    ref = jax.block_until_ready(ref_forward(x, params, stride=stride))

    assert out.shape == ref.shape == (N, out_c, H // stride, W // stride)
    # bf16 MXU operands vs f32 reference -> tolerance reflects bf16 rounding.
    err = float(jnp.max(jnp.abs(out - ref)))
    assert jnp.allclose(out, ref, atol=5e-2, rtol=5e-2), f"mismatch vs reference (max err {err})"


if __name__ == "__main__":
    key = jax.random.PRNGKey(0)
    k1, k2 = jax.random.split(key)

    # Small toy shapes; tm=256 so the M axis has >1 grid step (pipelining /
    # megacore sharding exercised).  Config A uses the fused projection
    # shortcut, config B the identity residual path.
    _run_and_check(k1, N=2, in_c=4, out_c=8, H=16, W=16, stride=1, tm=256)
    _run_and_check(k2, N=2, in_c=8, out_c=8, H=16, W=16, stride=1, tm=256)

    print("KERNEL_OK")
</pallas_src>

<mosaic_0001>
module attributes {stable_mosaic.version = 11 : i64} {
  func.func @kernel(%arg0: i32, %arg1: memref<256x36xbf16, #tpu.memory_space<vmem>>, %arg2: memref<36x128xbf16, #tpu.memory_space<vmem>>, %arg3: memref<1x128xf32, #tpu.memory_space<vmem>>, %arg4: memref<256x128xbf16, #tpu.memory_space<vmem>>) attributes {dimension_semantics = [#tpu.dimension_semantics<parallel>], iteration_bounds = array<i64: 2>, scalar_prefetch = 0 : i64, scratch_operands = 0 : i64, tpu.core_type = #tpu.core_type<tc>, window_params = [{transform_indices = @transform_0, window_bounds = array<i64: 256, 36>}, {pipeline_mode = #tpu.pipeline_mode<synchronous>, transform_indices = @transform_1, window_bounds = array<i64: 36, 128>}, {pipeline_mode = #tpu.pipeline_mode<synchronous>, transform_indices = @transform_2, window_bounds = array<i64: 1, 128>}, {transform_indices = @transform_3, window_bounds = array<i64: 256, 128>}]} {
    %c0 = arith.constant 0 : index
    %c0_0 = arith.constant 0 : index
    %0 = vector.load %arg1[%c0, %c0_0] : memref<256x36xbf16, #tpu.memory_space<vmem>>, vector<256x36xbf16>
    %c0_1 = arith.constant 0 : index
    %c0_2 = arith.constant 0 : index
    %1 = vector.load %arg2[%c0_1, %c0_2] : memref<36x128xbf16, #tpu.memory_space<vmem>>, vector<36x128xbf16>
    %cst = arith.constant dense<0.000000e+00> : vector<256x128xf32>
    %2 = tpu.matmul %0, %1, %cst {dimension_numbers = #tpu.dot_dimension_numbers<[1], [0], [0], [1], [0, 0, 1, 1], [], []>} : vector<256x36xbf16>, vector<36x128xbf16>, vector<256x128xf32> -> vector<256x128xf32>
    %c0_3 = arith.constant 0 : index
    %c0_4 = arith.constant 0 : index
    %3 = vector.load %arg3[%c0_3, %c0_4] : memref<1x128xf32, #tpu.memory_space<vmem>>, vector<1x128xf32>
    %4 = vector.broadcast %3 : vector<1x128xf32> to vector<256x128xf32>
    %5 = arith.addf %2, %4 : vector<256x128xf32>
    %cst_5 = arith.constant 0.000000e+00 : f32
    %6 = vector.broadcast %cst_5 : f32 to vector<256x128xf32>
    %7 = arith.maximumf %5, %6 : vector<256x128xf32>
    %8 = arith.truncf %7 : vector<256x128xf32> to vector<256x128xbf16>
    %c0_6 = arith.constant 0 : index
    %c0_7 = arith.constant 0 : index
    %9 = vector.load %arg4[%c0_6, %c0_7] : memref<256x128xbf16, #tpu.memory_space<vmem>>, vector<256x128xbf16>
    tpu.vector_store %arg4[%c0_6, %c0_7], %8 {strides = array<i32>} : memref<256x128xbf16, #tpu.memory_space<vmem>>, vector<256x128xbf16>,
    return
  }
  func.func @transform_0(%arg0: i32) -> (i32, i32) {
    %c0_i32 = arith.constant 0 : i32
    %c0_i32_0 = arith.constant 0 : i32
    return %arg0, %c0_i32 : i32, i32
  }
  func.func @transform_1(%arg0: i32) -> (i32, i32) {
    %c0_i32 = arith.constant 0 : i32
    %c0_i32_0 = arith.constant 0 : i32
    %c0_i32_1 = arith.constant 0 : i32
    return %c0_i32, %c0_i32_0 : i32, i32
  }
  func.func @transform_2(%arg0: i32) -> (i32, i32) {
    %c0_i32 = arith.constant 0 : i32
    %c0_i32_0 = arith.constant 0 : i32
    %c0_i32_1 = arith.constant 0 : i32
    return %c0_i32, %c0_i32_0 : i32, i32
  }
  func.func @transform_3(%arg0: i32) -> (i32, i32) {
    %c0_i32 = arith.constant 0 : i32
    %c0_i32_0 = arith.constant 0 : i32
    return %arg0, %c0_i32 : i32, i32
  }
}

</mosaic_0001>

<llo_original>
// kernel: tpu_custom_call.1
$region0: #{tpu_custom_call.1}
  #allocation0 [shape = 'u32[]', space=smem, size = 0x4, offset = 0x4, fixed_abs, tag = 'smem constant byte address 0x4 - core index']
  #allocation1 [shape = 'u32[144,128]{1,0:T(1,128)}', space=vmem, size = 0x12000, scoped, tag = 'internal scratch']
  %s0 = inlined_call_operand.vmem [shape: bf16[512,36], index: 0, kind: input, shape index: {}]
  %s1 = inlined_call_operand.vmem [shape: bf16[36,128], index: 1, kind: input, shape index: {}]
  %s2 = inlined_call_operand.vmem [shape: f32[1,128], index: 2, kind: input, shape index: {}]
  %s3 = inlined_call_operand.hbm [shape: bf16[512,128], index: 3, kind: output, shape index: {}]
  %s4 = sld [smem:[#allocation0]]
  $region45: #{tpu_custom_call.1} parent=0
    _
  %s6 = ssub.s32 1, %s4
  %s7 = scalar_select 0, %s6, %s4
  $region1: #{tpu_custom_call.1} parent=0
    #allocation2 [shape = 'u8[131072]{0}', space=vmem, size = 0x20000, scoped, tag = 'output window, operand 0']
    #allocation3 [shape = 's32[2]{0}', space=sflag, size = 0x8, scoped, tag = 'scoped memory for tpu_custom_call.1']
    %8 = vsyncpa [#allocation3], 0
    %s9 = scalar_lea.sflag [#allocation3], 1
    %10 = vsyncpa %s9, 0
    loop: start=0, step=1, limit=4
    $region2: #{tpu_custom_call.1} parent=1 // loop_pre_header
      _
    $region3: #{tpu_custom_call.1} parent=1 // loop_header
      %s12 = sphi 0, %s16
      %p13 = scmp.ge.s32.totalorder %s12, 4
      %s22 = sphi 0, %s24
      %s25 = sphi 0, %s22
      %s26 = sphi 0, %s25
      %s42 = sphi 0, %s26
      %s46 = sphi 0, %s46
      %s48 = sphi 0, %s46
      %s49 = sphi 0, %s48
      %s63 = sphi 0, %s49
      %s67 = sphi 0, %s67
      %s69 = sphi 0, %s67
      %s70 = sphi 0, %s69
      %s84 = sphi 0, %s70
      %s90 = sphi 0, %s92
      %s93 = sphi 0, %s90
      %s94 = sphi 0, %s93
      %s110 = sphi 0, %s94
    $region4: #{tpu_custom_call.1} parent=1 // loop_header_branch
      %15 = sbr.rel (%p13) target = $region8
    $region5: #{tpu_custom_call.1} parent=1 // loop_body
      %s17 = ssub.s32 %s12, 1
      %s18 = ssub.s32 %s12, 2
      %s19 = sadd.s32 %s12, 1
      %s20 = ssub.s32 %s12, %s19
      %p21 = scmp.eq.s32.totalorder %s20, 0
      %s23 = sadd.s32 %s22, 1
      %s24 = scalar_select %p21, %s22, %s23
      %p27 = pneg %p21
      %p28 = scmp.eq.s32.totalorder %s12, 1
      %p29 = por %p27, %p28
      %p30 = scmp.ne.s32.totalorder %s22, %s25
      %p31 = scmp.eq.s32.totalorder %s12, 0
      %p32 = por %p30, %p31
      %p33 = scmp.ne.s32.totalorder %s22, %s25
      %p34 = scmp.eq.s32.totalorder %s17, 1
      %p35 = por %p33, %p34
      %p36 = scmp.ne.s32.totalorder %s25, %s26
      %p37 = scmp.eq.s32.totalorder %s17, 0
      %p38 = por %p36, %p37
      %p39 = scmp.ne.s32.totalorder %s25, %s26
      %p40 = scmp.eq.s32.totalorder %s18, 1
      %p41 = por %p39, %p40
      %p43 = scmp.ne.s32.totalorder %s26, %s42
      %p44 = scmp.eq.s32.totalorder %s18, 0
      %p45 = por %p43, %p44
      %s47 = sadd.s32 %s46, 1
      %p50 = scmp.eq.s32.totalorder %s12, 1
      %p51 = scmp.ne.s32.totalorder %s46, %s48
      %p52 = scmp.eq.s32.totalorder %s12, 0
      %p53 = por %p51, %p52
      %p54 = scmp.ne.s32.totalorder %s46, %s48
      %p55 = scmp.eq.s32.totalorder %s17, 1
      %p56 = por %p54, %p55
      %p57 = scmp.ne.s32.totalorder %s48, %s49
      %p58 = scmp.eq.s32.totalorder %s17, 0
      %p59 = por %p57, %p58
      %p60 = scmp.ne.s32.totalorder %s48, %s49
      %p61 = scmp.eq.s32.totalorder %s18, 1
      %p62 = por %p60, %p61
      %p64 = scmp.ne.s32.totalorder %s49, %s63
      %p65 = scmp.eq.s32.totalorder %s18, 0
      %p66 = por %p64, %p65
      %s68 = sadd.s32 %s67, 1
      %p71 = scmp.eq.s32.totalorder %s12, 1
      %p72 = scmp.ne.s32.totalorder %s67, %s69
      %p73 = scmp.eq.s32.totalorder %s12, 0
      %p74 = por %p72, %p73
      %p75 = scmp.ne.s32.totalorder %s67, %s69
      %p76 = scmp.eq.s32.totalorder %s17, 1
      %p77 = por %p75, %p76
      %p78 = scmp.ne.s32.totalorder %s69, %s70
      %p79 = scmp.eq.s32.totalorder %s17, 0
      %p80 = por %p78, %p79
      %p81 = scmp.ne.s32.totalorder %s69, %s70
      %p82 = scmp.eq.s32.totalorder %s18, 1
      %p83 = por %p81, %p82
      %p85 = scmp.ne.s32.totalorder %s70, %s84
      %p86 = scmp.eq.s32.totalorder %s18, 0
      %p87 = por %p85, %p86
      %s88 = ssub.s32 %s12, %s19
      %p89 = scmp.eq.s32.totalorder %s88, 0
      %s91 = sadd.s32 %s90, 1
      %s92 = scalar_select %p89, %s90, %s91
      %p95 = pneg %p89
      %p96 = scmp.eq.s32.totalorder %s12, 1
      %p97 = por %p95, %p96
      %p98 = scmp.ne.s32.totalorder %s90, %s93
      %p99 = scmp.eq.s32.totalorder %s12, 0
      %p100 = por %p98, %p99
      %p101 = scmp.ne.s32.totalorder %s90, %s93
      %p102 = scmp.eq.s32.totalorder %s17, 1
      %p103 = por %p101, %p102
      %p104 = scmp.ne.s32.totalorder %s93, %s94
      %p105 = scmp.eq.s32.totalorder %s17, 0
      %p106 = por %p104, %p105
      %p107 = scmp.ne.s32.totalorder %s93, %s94
      %p108 = scmp.eq.s32.totalorder %s18, 1
      %p109 = por %p107, %p108
      %p111 = scmp.ne.s32.totalorder %s94, %s110
      %p112 = scmp.eq.s32.totalorder %s18, 0
      %p113 = por %p111, %p112
      %p114 = scmp.le.s32.totalorder 1, %s12
      %p115 = scmp.lt.s32.totalorder %s12, 3
      %p116 = pnand %p114, %p115
      %p117 = pneg %p116
      // Predicated region
      $region9: #{tpu_custom_call.1} parent=5 // pred_check
        _
      $region10: #{tpu_custom_call.1} parent=5 // pred_check_branch
        %119 = sbr.rel (%p116) target = $region12
      $region11: #{tpu_custom_call.1} parent=5 // pred_region
        %s120 = ssub.s32 %s12, 1
        // Predicated region
        $region13: #{tpu_custom_call.1} parent=11 // pred_check
          %p121 = pneg %p59
        $region14: #{tpu_custom_call.1} parent=11 // pred_check_branch
          %123 = sbr.rel (%p121) target = $region16
        $region15: #{tpu_custom_call.1} parent=11 // pred_region
          _
        $region16: #{tpu_custom_call.1} parent=11 // pred_fallthru
          _
        // Predicated region
        $region17: #{tpu_custom_call.1} parent=11 // pred_check
          %p124 = pneg %p80
        $region18: #{tpu_custom_call.1} parent=11 // pred_check_branch
          %126 = sbr.rel (%p124) target = $region20
        $region19: #{tpu_custom_call.1} parent=11 // pred_region
          _
        $region20: #{tpu_custom_call.1} parent=11 // pred_fallthru
          _
      $region12: #{tpu_custom_call.1} parent=5 // pred_fallthru
        _
      %p127 = scmp.lt.s32.totalorder %s12, 2
      // Predicated region
      $region21: #{tpu_custom_call.1} parent=5 // pred_check
        %p128 = pneg %p127
      $region22: #{tpu_custom_call.1} parent=5 // pred_check_branch
        %130 = sbr.rel (%p128) target = $region24
      $region23: #{tpu_custom_call.1} parent=5 // pred_region
        // Predicated region
        $region25: #{tpu_custom_call.1} parent=23 // pred_check
          %p131 = pneg %p32
        $region26: #{tpu_custom_call.1} parent=23 // pred_check_branch
          %133 = sbr.rel (%p131) target = $region28
        $region27: #{tpu_custom_call.1} parent=23 // pred_region
          %s134 = smul.u32 32, %s12
          %p135 = scmp.lt.s32.totalorder %s134, 63
          %s136 = scalar_select %p135, %s134, 63
          %s137 = smul.addr %s136, 4
          %s138 = scalar_lea.vmem %s0, %s137
          %s139 = smul.u32 32, %s12
        $region28: #{tpu_custom_call.1} parent=23 // pred_fallthru
          _
      $region24: #{tpu_custom_call.1} parent=5 // pred_fallthru
        _
      %p140 = scmp.le.s32.totalorder 1, %s12
      %p141 = scmp.lt.s32.totalorder %s12, 3
      %p142 = pnand %p140, %p141
      %p143 = pneg %p142
      // Predicated region
      $region29: #{tpu_custom_call.1} parent=5 // pred_check
        _
      $region30: #{tpu_custom_call.1} parent=5 // pred_check_branch
        %145 = sbr.rel (%p142) target = $region32
      $region31: #{tpu_custom_call.1} parent=5 // pred_region
        %s146 = ssub.s32 %s12, 1
        %s147 = smul.u32 32, %s17
        %p148 = scmp.lt.s32.totalorder %s147, 63
        %s149 = scalar_select %p148, %s147, 63
        %s150 = smul.addr %s149, 4
        %s151 = scalar_lea.vmem %s0, %s150
        %p152 = pneg %p38
        %p153 = pneg %p35
        %p154 = pneg %p59
        %p155 = pneg %p56
        %p156 = pneg %p80
        %p157 = pneg %p77
        %p158 = pneg %p106
        %p159 = pneg %p103
        %s160 = sand.u32 %s93, 1
        %s161 = scalar_lea.sflag [#allocation3], %s160
        %s162 = sand.u32 %s93, 1
        %s163 = smul.addr %s162, 128
        %s164 = scalar_lea.vmem [#allocation2], %s163
        %s165 = smul.u32 32, %s17
        %p166 = scmp.lt.s32.totalorder %s165, 63
        %s167 = scalar_select %p166, %s165, 63
        %s168 = smul.addr %s167, 4
        %s169 = scalar_lea.vmem %s0, %s168
        %s170 = smul.u32 32, %s17
        %s171 = smul.u32 32, %s17
        %v173 = vld [vmem:[%s169] sm:$0xf]
        %v174 = vld [vmem:[%s169 + $0x4] sm:$0xf]
        %v175 = vld [vmem:[%s169 + $0x8] sm:$0xf]
        %v176 = vld [vmem:[%s169 + $0xc] sm:$0xf]
        %v177 = vld [vmem:[%s169 + $0x10] sm:$0xf]
        %v178 = vld [vmem:[%s169 + $0x14] sm:$0xf]
        %v179 = vld [vmem:[%s169 + $0x18] sm:$0xf]
        %v180 = vld [vmem:[%s169 + $0x1c] sm:$0xf]
        %v181 = vld [vmem:[%s169 + $0x20] sm:$0xf]
        %v182 = vld [vmem:[%s169 + $0x24] sm:$0xf]
        %v183 = vld [vmem:[%s169 + $0x28] sm:$0xf]
        %v184 = vld [vmem:[%s169 + $0x2c] sm:$0xf]
        %v185 = vld [vmem:[%s169 + $0x30] sm:$0xf]
        %v186 = vld [vmem:[%s169 + $0x34] sm:$0xf]
        %v187 = vld [vmem:[%s169 + $0x38] sm:$0xf]
        %v188 = vld [vmem:[%s169 + $0x3c] sm:$0xf]
        %v189 = vld [vmem:[%s169 + $0x40] sm:$0xf]
        %v190 = vld [vmem:[%s169 + $0x44] sm:$0xf]
        %v191 = vld [vmem:[%s169 + $0x48] sm:$0xf]
        %v192 = vld [vmem:[%s169 + $0x4c] sm:$0xf]
        %v193 = vld [vmem:[%s169 + $0x50] sm:$0xf]
        %v194 = vld [vmem:[%s169 + $0x54] sm:$0xf]
        %v195 = vld [vmem:[%s169 + $0x58] sm:$0xf]
        %v196 = vld [vmem:[%s169 + $0x5c] sm:$0xf]
        %v197 = vld [vmem:[%s169 + $0x60] sm:$0xf]
        %v198 = vld [vmem:[%s169 + $0x64] sm:$0xf]
        %v199 = vld [vmem:[%s169 + $0x68] sm:$0xf]
        %v200 = vld [vmem:[%s169 + $0x6c] sm:$0xf]
        %v201 = vld [vmem:[%s169 + $0x70] sm:$0xf]
        %v202 = vld [vmem:[%s169 + $0x74] sm:$0xf]
        %v203 = vld [vmem:[%s169 + $0x78] sm:$0xf]
        %v204 = vld [vmem:[%s169 + $0x7c] sm:$0xf]
        %v205 = vld [vmem:[%s1] sm:$0xf]
        %v206 = vld [vmem:[%s1 + $0x4] sm:$0xf]
        %v207 = vld [vmem:[%s1 + $0x8] sm:$0xf]
        %v208 = vld [vmem:[%s1 + $0xc] sm:$0xf]
        %v209 = vld [vmem:[%s1 + $0x10] sm:$0x3]
        %v210 = vld [vmem:[%s2] sm:$0x1]
        %v212 = vlaneseq
        %v213 = vshrl.u32 %v212, 7
        %v214 = vsub.s32 0, %v213
        %v215 = vrot.slane %v210, %v214
        %v249 = vunpack.c.l.b16 %v173
        %v250 = vunpack.c.l.b16 %v174
        %v251 = vunpack.c.l.b16 %v175
        %v252 = vunpack.c.l.b16 %v176
        %v253 = vunpack.c.l.b16 %v177
        %v254 = vunpack.c.l.b16 %v178
        %v255 = vunpack.c.l.b16 %v179
        %v256 = vunpack.c.l.b16 %v180
        %v257 = vunpack.c.l.b16 %v181
        %v258 = vunpack.c.l.b16 %v182
        %v259 = vunpack.c.l.b16 %v183
        %v260 = vunpack.c.l.b16 %v184
        %v261 = vunpack.c.l.b16 %v185
        %v262 = vunpack.c.l.b16 %v186
        %v263 = vunpack.c.l.b16 %v187
        %v264 = vunpack.c.l.b16 %v188
        %v265 = vunpack.c.l.b16 %v189
        %v266 = vunpack.c.l.b16 %v190
        %v267 = vunpack.c.l.b16 %v191
        %v268 = vunpack.c.l.b16 %v192
        %v269 = vunpack.c.l.b16 %v193
        %v270 = vunpack.c.l.b16 %v194
        %v271 = vunpack.c.l.b16 %v195
        %v272 = vunpack.c.l.b16 %v196
        %v273 = vunpack.c.l.b16 %v197
        %v274 = vunpack.c.l.b16 %v198
        %v275 = vunpack.c.l.b16 %v199
        %v276 = vunpack.c.l.b16 %v200
        %v277 = vunpack.c.l.b16 %v201
        %v278 = vunpack.c.l.b16 %v202
        %v279 = vunpack.c.l.b16 %v203
        %v280 = vunpack.c.l.b16 %v204
        %v281 = vpack.c.b16 %v250, %v249
        %v282 = vpack.c.b16 %v252, %v251
        %v283 = vpack.c.b16 %v254, %v253
        %v284 = vpack.c.b16 %v256, %v255
        %v285 = vpack.c.b16 %v258, %v257
        %v286 = vpack.c.b16 %v260, %v259
        %v287 = vpack.c.b16 %v262, %v261
        %v288 = vpack.c.b16 %v264, %v263
        %v289 = vpack.c.b16 %v266, %v265
        %v290 = vpack.c.b16 %v268, %v267
        %v291 = vpack.c.b16 %v270, %v269
        %v292 = vpack.c.b16 %v272, %v271
        %v293 = vpack.c.b16 %v274, %v273
        %v294 = vpack.c.b16 %v276, %v275
        %v295 = vpack.c.b16 %v278, %v277
        %v296 = vpack.c.b16 %v280, %v279
        %v302 = vunpack.c.l.b16 %v205
        %v303 = vunpack.c.l.b16 %v206
        %v304 = vunpack.c.l.b16 %v207
        %v305 = vunpack.c.l.b16 %v208
        %v306 = vunpack.c.l.b16 %v209
        %v307 = vpack.c.b16 %v303, %v302
        %v308 = vpack.c.b16 %v305, %v304
        %v309 = vpack.c.b16 %v306, %v306
        %vm312 = vcmask 293888
        %v314 = vsel %vm312, %v281, 0
        %v317 = vsel %vm312, %v282, 0
        %v320 = vsel %vm312, %v283, 0
        %v323 = vsel %vm312, %v284, 0
        %v326 = vsel %vm312, %v285, 0
        %v329 = vsel %vm312, %v286, 0
        %v332 = vsel %vm312, %v287, 0
        %v335 = vsel %vm312, %v288, 0
        %v338 = vsel %vm312, %v289, 0
        %v341 = vsel %vm312, %v290, 0
        %v344 = vsel %vm312, %v291, 0
        %v347 = vsel %vm312, %v292, 0
        %v350 = vsel %vm312, %v293, 0
        %v353 = vsel %vm312, %v294, 0
        %v356 = vsel %vm312, %v295, 0
        %v359 = vsel %vm312, %v296, 0
        %vm361 = vcmask 1041408
        %v363 = vsel %vm361, %v309, 0
        %365 = vmatprep.subr.bf16.mxu0 0
        %366 = vmatpush1.bf16.msra.mxu0 %v307
        %367 = vmatprep.subr.bf16.mxu0 0
        %368 = vmatpush1.bf16.msra.mxu0 %v308
        %369 = vmatprep.subr.bf16.mxu0 0
        %370 = vmatpush1.bf16.msra.mxu0 %v363
        %371 = vmatprep.subr.bf16.mxu0 0
        %372 = vmatpush1.bf16.msra.mxu0 0
        %373 = vmatprep.subr.bf16.mxu0 0
        %374 = vmatpush1.bf16.msra.mxu0 0
        %375 = vmatprep.subr.bf16.mxu0 0
        %376 = vmatpush1.bf16.msra.mxu0 0
        %377 = vmatprep.subr.bf16.mxu0 0
        %378 = vmatpush1.bf16.msra.mxu0 0
        %379 = vmatprep.subr.bf16.mxu0 0
        %380 = vmatpush1.bf16.msra.mxu0 0
        %381 = vmatprep.subr.bf16.mxu0 0
        %382 = vmatpush1.bf16.msra.mxu0 0
        %383 = vmatprep.subr.bf16.mxu0 0
        %384 = vmatpush1.bf16.msra.mxu0 0
        %385 = vmatprep.subr.bf16.mxu0 0
        %386 = vmatpush1.bf16.msra.mxu0 0
        %387 = vmatprep.subr.bf16.mxu0 0
        %388 = vmatpush1.bf16.msra.mxu0 0
        %389 = vmatprep.subr.bf16.mxu0 0
        %390 = vmatpush1.bf16.msra.mxu0 0
        %391 = vmatprep.subr.bf16.mxu0 0
        %392 = vmatpush1.bf16.msra.mxu0 0
        %393 = vmatprep.subr.bf16.mxu0 0
        %394 = vmatpush1.bf16.msra.mxu0 0
        %395 = vmatprep.subr.bf16.mxu0 0
        %396 = vmatpush1.bf16.msra.mxu0 0
        %397 = vmatprep.mubr.bf16.mxu0 0
        %398 = vmatmul.mubr.bf16.gmra.mrb[0].mxu0 %v314
        %v399 = vpop.f32.mrb[0].mxu0
        %v400 = vadd.f32 %v215, %v399
        %v401 = vpop.f32.mrb[0].mxu0
        %v402 = vpop.f32.mrb[0].mxu0
        %v403 = vadd.f32 %v215, %v402
        %v404 = vpop.f32.mrb[0].mxu0
        %405 = vmatprep.mubr.bf16.mxu0 0
        %406 = vmatmul.mubr.bf16.gmra.mrb[0].mxu0 %v317
        %v407 = vpop.f32.mrb[0].mxu0
        %v408 = vadd.f32 %v215, %v407
        %v409 = vpop.f32.mrb[0].mxu0
        %v410 = vpop.f32.mrb[0].mxu0
        %v411 = vadd.f32 %v215, %v410
        %v412 = vpop.f32.mrb[0].mxu0
        %413 = vmatprep.mubr.bf16.mxu0 0
        %414 = vmatmul.mubr.bf16.gmra.mrb[0].mxu0 %v320
        %v415 = vpop.f32.mrb[0].mxu0
        %v416 = vadd.f32 %v215, %v415
        %v417 = vpop.f32.mrb[0].mxu0
        %v418 = vpop.f32.mrb[0].mxu0
        %v419 = vadd.f32 %v215, %v418
        %v420 = vpop.f32.mrb[0].mxu0
        %421 = vmatprep.mubr.bf16.mxu0 0
        %422 = vmatmul.mubr.bf16.gmra.mrb[0].mxu0 %v323
        %v423 = vpop.f32.mrb[0].mxu0
        %v424 = vadd.f32 %v215, %v423
        %v425 = vpop.f32.mrb[0].mxu0
        %v426 = vpop.f32.mrb[0].mxu0
        %v427 = vadd.f32 %v215, %v426
        %v428 = vpop.f32.mrb[0].mxu0
        %429 = vmatprep.mubr.bf16.mxu0 0
        %430 = vmatmul.mubr.bf16.gmra.mrb[0].mxu0 %v326
        %v431 = vpop.f32.mrb[0].mxu0
        %v432 = vadd.f32 %v215, %v431
        %v433 = vpop.f32.mrb[0].mxu0
        %v434 = vpop.f32.mrb[0].mxu0
        %v435 = vadd.f32 %v215, %v434
        %v436 = vpop.f32.mrb[0].mxu0
        %437 = vmatprep.mubr.bf16.mxu0 0
        %438 = vmatmul.mubr.bf16.gmra.mrb[0].mxu0 %v329
        %v439 = vpop.f32.mrb[0].mxu0
        %v440 = vadd.f32 %v215, %v439
        %v441 = vpop.f32.mrb[0].mxu0
        %v442 = vpop.f32.mrb[0].mxu0
        %v443 = vadd.f32 %v215, %v442
        %v444 = vpop.f32.mrb[0].mxu0
        %445 = vmatprep.mubr.bf16.mxu0 0
        %446 = vmatmul.mubr.bf16.gmra.mrb[0].mxu0 %v332
        %v447 = vpop.f32.mrb[0].mxu0
        %v448 = vadd.f32 %v215, %v447
        %v449 = vpop.f32.mrb[0].mxu0
        %v450 = vpop.f32.mrb[0].mxu0
        %v451 = vadd.f32 %v215, %v450
        %v452 = vpop.f32.mrb[0].mxu0
        %453 = vmatprep.mubr.bf16.mxu0 0
        %454 = vmatmul.mubr.bf16.gmra.mrb[0].mxu0 %v335
        %v455 = vpop.f32.mrb[0].mxu0
        %v456 = vadd.f32 %v215, %v455
        %v457 = vpop.f32.mrb[0].mxu0
        %v458 = vpop.f32.mrb[0].mxu0
        %v459 = vadd.f32 %v215, %v458
        %v460 = vpop.f32.mrb[0].mxu0
        %461 = vmatprep.mubr.bf16.mxu0 0
        %462 = vmatmul.mubr.bf16.gmra.mrb[0].mxu0 %v338
        %v463 = vpop.f32.mrb[0].mxu0
        %v464 = vadd.f32 %v215, %v463
        %v465 = vpop.f32.mrb[0].mxu0
        %v466 = vpop.f32.mrb[0].mxu0
        %v467 = vadd.f32 %v215, %v466
        %v468 = vpop.f32.mrb[0].mxu0
        %469 = vmatprep.mubr.bf16.mxu0 0
        %470 = vmatmul.mubr.bf16.gmra.mrb[0].mxu0 %v341
        %v471 = vpop.f32.mrb[0].mxu0
        %v472 = vadd.f32 %v215, %v471
        %v473 = vpop.f32.mrb[0].mxu0
        %v474 = vpop.f32.mrb[0].mxu0
        %v475 = vadd.f32 %v215, %v474
        %v476 = vpop.f32.mrb[0].mxu0
        %477 = vmatprep.mubr.bf16.mxu0 0
        %478 = vmatmul.mubr.bf16.gmra.mrb[0].mxu0 %v344
        %v479 = vpop.f32.mrb[0].mxu0
        %v480 = vadd.f32 %v215, %v479
        %v481 = vpop.f32.mrb[0].mxu0
        %v482 = vpop.f32.mrb[0].mxu0
        %v483 = vadd.f32 %v215, %v482
        %v484 = vpop.f32.mrb[0].mxu0
        %485 = vmatprep.mubr.bf16.mxu0 0
        %486 = vmatmul.mubr.bf16.gmra.mrb[0].mxu0 %v347
        %v487 = vpop.f32.mrb[0].mxu0
        %v488 = vadd.f32 %v215, %v487
        %v489 = vpop.f32.mrb[0].mxu0
        %v490 = vpop.f32.mrb[0].mxu0
        %v491 = vadd.f32 %v215, %v490
        %v492 = vpop.f32.mrb[0].mxu0
        %493 = vmatprep.mubr.bf16.mxu0 0
        %494 = vmatmul.mubr.bf16.gmra.mrb[0].mxu0 %v350
        %v495 = vpop.f32.mrb[0].mxu0
        %v496 = vadd.f32 %v215, %v495
        %v497 = vpop.f32.mrb[0].mxu0
        %v498 = vpop.f32.mrb[0].mxu0
        %v499 = vadd.f32 %v215, %v498
        %v500 = vpop.f32.mrb[0].mxu0
        %501 = vmatprep.mubr.bf16.mxu0 0
        %502 = vmatmul.mubr.bf16.gmra.mrb[0].mxu0 %v353
        %v503 = vpop.f32.mrb[0].mxu0
        %v504 = vadd.f32 %v215, %v503
        %v505 = vpop.f32.mrb[0].mxu0
        %v506 = vpop.f32.mrb[0].mxu0
        %v507 = vadd.f32 %v215, %v506
        %v508 = vpop.f32.mrb[0].mxu0
        %509 = vmatprep.mubr.bf16.mxu0 0
        %510 = vmatmul.mubr.bf16.gmra.mrb[0].mxu0 %v356
        %v511 = vpop.f32.mrb[0].mxu0
        %v512 = vadd.f32 %v215, %v511
        %v513 = vpop.f32.mrb[0].mxu0
        %v514 = vpop.f32.mrb[0].mxu0
        %v515 = vadd.f32 %v215, %v514
        %v516 = vpop.f32.mrb[0].mxu0
        %517 = vmatprep.mubr.bf16.mxu0 0
        %518 = vmatmul.mubr.bf16.gmra.mrb[0].mxu0 %v359
        %v519 = vpop.f32.mrb[0].mxu0
        %v520 = vadd.f32 %v215, %v519
        %v521 = vpop.f32.mrb[0].mxu0
        %v522 = vpop.f32.mrb[0].mxu0
        %v523 = vadd.f32 %v215, %v522
        %v524 = vpop.f32.mrb[0].mxu0
        %525 = vdwg.mxu0
        %v526 = vmax.f32 %v400, 0.0
        %v527 = vmax.f32 %v403, 0.0
        %v528 = vmax.f32 %v408, 0.0
        %v529 = vmax.f32 %v411, 0.0
        %v530 = vmax.f32 %v416, 0.0
        %v531 = vmax.f32 %v419, 0.0
        %v532 = vmax.f32 %v424, 0.0
        %v533 = vmax.f32 %v427, 0.0
        %v534 = vmax.f32 %v432, 0.0
        %v535 = vmax.f32 %v435, 0.0
        %v536 = vmax.f32 %v440, 0.0
        %v537 = vmax.f32 %v443, 0.0
        %v538 = vmax.f32 %v448, 0.0
        %v539 = vmax.f32 %v451, 0.0
        %v540 = vmax.f32 %v456, 0.0
        %v541 = vmax.f32 %v459, 0.0
        %v542 = vmax.f32 %v464, 0.0
        %v543 = vmax.f32 %v467, 0.0
        %v544 = vmax.f32 %v472, 0.0
        %v545 = vmax.f32 %v475, 0.0
        %v546 = vmax.f32 %v480, 0.0
        %v547 = vmax.f32 %v483, 0.0
        %v548 = vmax.f32 %v488, 0.0
        %v549 = vmax.f32 %v491, 0.0
        %v550 = vmax.f32 %v496, 0.0
        %v551 = vmax.f32 %v499, 0.0
        %v552 = vmax.f32 %v504, 0.0
        %v553 = vmax.f32 %v507, 0.0
        %v554 = vmax.f32 %v512, 0.0
        %v555 = vmax.f32 %v515, 0.0
        %v556 = vmax.f32 %v520, 0.0
        %v557 = vmax.f32 %v523, 0.0
        %v558 = vpack.c.bf16 %v527, %v526
        %v559 = vpack.c.bf16 %v529, %v528
        %v560 = vpack.c.bf16 %v531, %v530
        %v561 = vpack.c.bf16 %v533, %v532
        %v562 = vpack.c.bf16 %v535, %v534
        %v563 = vpack.c.bf16 %v537, %v536
        %v564 = vpack.c.bf16 %v539, %v538
        %v565 = vpack.c.bf16 %v541, %v540
        %v566 = vpack.c.bf16 %v543, %v542
        %v567 = vpack.c.bf16 %v545, %v544
        %v568 = vpack.c.bf16 %v547, %v546
        %v569 = vpack.c.bf16 %v549, %v548
        %v570 = vpack.c.bf16 %v551, %v550
        %v571 = vpack.c.bf16 %v553, %v552
        %v572 = vpack.c.bf16 %v555, %v554
        %v573 = vpack.c.bf16 %v557, %v556
        %v590 = vunpack.c.l.b16 %v558
        %v591 = vunpack.c.h.b16 %v558
        %v592 = vunpack.c.l.b16 %v559
        %v593 = vunpack.c.h.b16 %v559
        %v594 = vunpack.c.l.b16 %v560
        %v595 = vunpack.c.h.b16 %v560
        %v596 = vunpack.c.l.b16 %v561
        %v597 = vunpack.c.h.b16 %v561
        %v598 = vunpack.c.l.b16 %v562
        %v599 = vunpack.c.h.b16 %v562
        %v600 = vunpack.c.l.b16 %v563
        %v601 = vunpack.c.h.b16 %v563
        %v602 = vunpack.c.l.b16 %v564
        %v603 = vunpack.c.h.b16 %v564
        %v604 = vunpack.c.l.b16 %v565
        %v605 = vunpack.c.h.b16 %v565
        %v606 = vunpack.c.l.b16 %v566
        %v607 = vunpack.c.h.b16 %v566
        %v608 = vunpack.c.l.b16 %v567
        %v609 = vunpack.c.h.b16 %v567
        %v610 = vunpack.c.l.b16 %v568
        %v611 = vunpack.c.h.b16 %v568
        %v612 = vunpack.c.l.b16 %v569
        %v613 = vunpack.c.h.b16 %v569
        %v614 = vunpack.c.l.b16 %v570
        %v615 = vunpack.c.h.b16 %v570
        %v616 = vunpack.c.l.b16 %v571
        %v617 = vunpack.c.h.b16 %v571
        %v618 = vunpack.c.l.b16 %v572
        %v619 = vunpack.c.h.b16 %v572
        %v620 = vunpack.c.l.b16 %v573
        %v621 = vunpack.c.h.b16 %v573
        %v622 = vpack.c.b16 %v590, %v590
        %v623 = vpack.c.b16 %v591, %v591
        %v624 = vpack.c.b16 %v592, %v592
        %v625 = vpack.c.b16 %v593, %v593
        %v626 = vpack.c.b16 %v594, %v594
        %v627 = vpack.c.b16 %v595, %v595
        %v628 = vpack.c.b16 %v596, %v596
        %v629 = vpack.c.b16 %v597, %v597
        %v630 = vpack.c.b16 %v598, %v598
        %v631 = vpack.c.b16 %v599, %v599
        %v632 = vpack.c.b16 %v600, %v600
        %v633 = vpack.c.b16 %v601, %v601
        %v634 = vpack.c.b16 %v602, %v602
        %v635 = vpack.c.b16 %v603, %v603
        %v636 = vpack.c.b16 %v604, %v604
        %v637 = vpack.c.b16 %v605, %v605
        %v638 = vpack.c.b16 %v606, %v606
        %v639 = vpack.c.b16 %v607, %v607
        %v640 = vpack.c.b16 %v608, %v608
        %v641 = vpack.c.b16 %v609, %v609
        %v642 = vpack.c.b16 %v610, %v610
        %v643 = vpack.c.b16 %v611, %v611
        %v644 = vpack.c.b16 %v612, %v612
        %v645 = vpack.c.b16 %v613, %v613
        %v646 = vpack.c.b16 %v614, %v614
        %v647 = vpack.c.b16 %v615, %v615
        %v648 = vpack.c.b16 %v616, %v616
        %v649 = vpack.c.b16 %v617, %v617
        %v650 = vpack.c.b16 %v618, %v618
        %v651 = vpack.c.b16 %v619, %v619
        %v652 = vpack.c.b16 %v620, %v620
        %v653 = vpack.c.b16 %v621, %v621
        %686 = vst [vmem:[%s164] sm:$0xf] %v622
        %687 = vst [vmem:[%s164 + $0x4] sm:$0xf] %v623
        %688 = vst [vmem:[%s164 + $0x8] sm:$0xf] %v624
        %689 = vst [vmem:[%s164 + $0xc] sm:$0xf] %v625
        %690 = vst [vmem:[%s164 + $0x10] sm:$0xf] %v626
        %691 = vst [vmem:[%s164 + $0x14] sm:$0xf] %v627
        %692 = vst [vmem:[%s164 + $0x18] sm:$0xf] %v628
        %693 = vst [vmem:[%s164 + $0x1c] sm:$0xf] %v629
        %694 = vst [vmem:[%s164 + $0x20] sm:$0xf] %v630
        %695 = vst [vmem:[%s164 + $0x24] sm:$0xf] %v631
        %696 = vst [vmem:[%s164 + $0x28] sm:$0xf] %v632
        %697 = vst [vmem:[%s164 + $0x2c] sm:$0xf] %v633
        %698 = vst [vmem:[%s164 + $0x30] sm:$0xf] %v634
        %699 = vst [vmem:[%s164 + $0x34] sm:$0xf] %v635
        %700 = vst [vmem:[%s164 + $0x38] sm:$0xf] %v636
        %701 = vst [vmem:[%s164 + $0x3c] sm:$0xf] %v637
        %702 = vst [vmem:[%s164 + $0x40] sm:$0xf] %v638
        %703 = vst [vmem:[%s164 + $0x44] sm:$0xf] %v639
        %704 = vst [vmem:[%s164 + $0x48] sm:$0xf] %v640
        %705 = vst [vmem:[%s164 + $0x4c] sm:$0xf] %v641
        %706 = vst [vmem:[%s164 + $0x50] sm:$0xf] %v642
        %707 = vst [vmem:[%s164 + $0x54] sm:$0xf] %v643
        %708 = vst [vmem:[%s164 + $0x58] sm:$0xf] %v644
        %709 = vst [vmem:[%s164 + $0x5c] sm:$0xf] %v645
        %710 = vst [vmem:[%s164 + $0x60] sm:$0xf] %v646
        %711 = vst [vmem:[%s164 + $0x64] sm:$0xf] %v647
        %712 = vst [vmem:[%s164 + $0x68] sm:$0xf] %v648
        %713 = vst [vmem:[%s164 + $0x6c] sm:$0xf] %v649
        %714 = vst [vmem:[%s164 + $0x70] sm:$0xf] %v650
        %715 = vst [vmem:[%s164 + $0x74] sm:$0xf] %v651
        %716 = vst [vmem:[%s164 + $0x78] sm:$0xf] %v652
        %717 = vst [vmem:[%s164 + $0x7c] sm:$0xf] %v653
        %s718 = sand.u32 %s93, 1
        %s719 = scalar_lea.sflag [#allocation3], %s718
        %s720 = sand.u32 %s93, 1
        %s721 = smul.addr %s720, 128
        %s722 = scalar_lea.vmem [#allocation2], %s721
        // Predicated region
        $region33: #{tpu_custom_call.1} parent=31 // pred_check
          %p723 = pneg %p103
        $region34: #{tpu_custom_call.1} parent=31 // pred_check_branch
          %725 = sbr.rel (%p723) target = $region36
        $region35: #{tpu_custom_call.1} parent=31 // pred_region
          %s726 = smul.u32 32, %s17
          %s728 = ssub.s32 2048, 2048
          %729 = vsyncadd %s719, %s728
          %s730 = smul.addr %s726, 64
          %s731 = scalar_lea.hbm %s3, %s730
          %s732 = sshll.u32 %s722, 4
          %s733 = int_to_ptr.vmem [resolvable:$true] %s732
          %738 = dma.vmem_to_hbm [thread:$0]  %s733, 2048, %s731, %s719, 64, 64, 4
        $region36: #{tpu_custom_call.1} parent=31 // pred_fallthru
          _
      $region32: #{tpu_custom_call.1} parent=5 // pred_fallthru
        _
      %p739 = scmp.le.s32.totalorder 2, %s12
      // Predicated region
      $region37: #{tpu_custom_call.1} parent=5 // pred_check
        %p740 = pneg %p739
      $region38: #{tpu_custom_call.1} parent=5 // pred_check_branch
        %742 = sbr.rel (%p740) target = $region40
      $region39: #{tpu_custom_call.1} parent=5 // pred_region
        %s743 = ssub.s32 %s12, 2
        // Predicated region
        $region41: #{tpu_custom_call.1} parent=39 // pred_check
          %p744 = pneg %p109
        $region42: #{tpu_custom_call.1} parent=39 // pred_check_branch
          %746 = sbr.rel (%p744) target = $region44
        $region43: #{tpu_custom_call.1} parent=39 // pred_region
          %s747 = sand.u32 %s94, 1
          %s748 = scalar_lea.sflag [#allocation3], %s747
          %s749 = sand.u32 %s94, 1
          %s750 = smul.addr %s749, 128
          %s751 = scalar_lea.vmem [#allocation2], %s750
          %752 = dma.done %s748, 2048
        $region44: #{tpu_custom_call.1} parent=39 // pred_fallthru
          _
      $region40: #{tpu_custom_call.1} parent=5 // pred_fallthru
        _
    $region6: #{tpu_custom_call.1} parent=1 // loop_footer
      %s16 = sadd.s32 1, %s12
    $region7: #{tpu_custom_call.1} parent=1 // loop_footer_branch
      %11 = sbr.rel target = $region3
    $region8: #{tpu_custom_call.1} parent=1 // loop_exit
      _
    %753 = vsyncpa [#allocation3], 1
    %s754 = scalar_lea.sflag [#allocation3], 1
    %755 = vsyncpa %s754, 1

</llo_original>
